<compile_context>
chip_gen: v5e
topology: v5e:2x2
jax: 0.10.0
libtpu: 0.0.40
codegen_flags: <defaults>
</compile_context>

<pallas_src>
import functools
import math

import jax
import jax.numpy as jnp
from jax import lax
from jax.experimental import pallas as pl
from jax.experimental.pallas import tpu as pltpu


# --------------------------- small config helpers --------------------------- #

def _vmem_limit_bytes():
    try:
        return int(pltpu.get_tpu_info().vmem_capacity_bytes * 3 // 4)
    except Exception:
        return 32 * 1024 * 1024  # conservative, fits every supported generation


_VMEM_LIMIT = _vmem_limit_bytes()


def _compiler_params(dimension_semantics):
    return pltpu.CompilerParams(dimension_semantics=dimension_semantics,
                                vmem_limit_bytes=_VMEM_LIMIT)


def _pick_tile(dim, target, align):
    """Largest tile <= target that is a multiple of `align` and divides `dim`.
    Falls back to the full dimension (always a legal block size)."""
    if dim <= target:
        return dim
    t = (min(target, dim) // align) * align
    while t >= align:
        if dim % t == 0:
            return t
        t -= align
    return dim


# ----------------------------- Pallas kernels ------------------------------ #

def _qkv_proj_kernel(x_ref, w_ref, b_ref, o_ref):
    # x: (1, tm, Din), w: (1, Din, tn), b: (1, 1, tn), o: (1, tm, tn)
    acc = jnp.dot(x_ref[0], w_ref[0], preferred_element_type=jnp.float32)
    o_ref[0] = (acc + b_ref[0]).astype(o_ref.dtype)


def qkv_projection(x_stack, w_stack, b_stack, *, tm_target=256, tn_target=512):
    """Fused Q/K/V projection: out[p] = x_stack[p] @ w_stack[p] + b_stack[p]."""
    P, M, Din = x_stack.shape
    Dout = w_stack.shape[2]
    tm = _pick_tile(M, tm_target, 8)      # sublane-aligned row tile
    tn = _pick_tile(Dout, tn_target, 128)  # lane-aligned column tile
    grid = (P, M // tm, Dout // tn)
    return pl.pallas_call(
        _qkv_proj_kernel,
        out_shape=jax.ShapeDtypeStruct((P, M, Dout), x_stack.dtype),
        grid=grid,
        in_specs=[
            pl.BlockSpec((1, tm, Din), lambda p, i, j: (p, i, 0)),
            pl.BlockSpec((1, Din, tn), lambda p, i, j: (p, 0, j)),
            pl.BlockSpec((1, 1, tn), lambda p, i, j: (p, 0, j)),
        ],
        out_specs=pl.BlockSpec((1, tm, tn), lambda p, i, j: (p, i, j)),
        compiler_params=_compiler_params(("parallel", "parallel", "parallel")),
    )(x_stack, w_stack, b_stack)


def _linear_kernel(x_ref, w_ref, b_ref, o_ref):
    # x: (tm, Din), w: (Din, tn), b: (1, tn), o: (tm, tn)
    acc = jnp.dot(x_ref[...], w_ref[...], preferred_element_type=jnp.float32)
    o_ref[...] = (acc + b_ref[...]).astype(o_ref.dtype)


def linear(x2d, w, b, *, tm_target=256, tn_target=512):
    """out = x2d @ w + b   (w stored as (in, out), i.e. PyTorch weight.T)"""
    M, Din = x2d.shape
    Dout = w.shape[1]
    tm = _pick_tile(M, tm_target, 8)
    tn = _pick_tile(Dout, tn_target, 128)
    grid = (M // tm, Dout // tn)
    return pl.pallas_call(
        _linear_kernel,
        out_shape=jax.ShapeDtypeStruct((M, Dout), x2d.dtype),
        grid=grid,
        in_specs=[
            pl.BlockSpec((tm, Din), lambda i, j: (i, 0)),
            pl.BlockSpec((Din, tn), lambda i, j: (0, j)),
            pl.BlockSpec((1, tn), lambda i, j: (0, j)),
        ],
        out_specs=pl.BlockSpec((tm, tn), lambda i, j: (i, j)),
        compiler_params=_compiler_params(("parallel", "parallel")),
    )(x2d, w, b)


def _mha_attention_kernel(q_ref, k_ref, v_ref, bias_ref, o_ref, *, heads):
    # q: (1, tq, d_model)   (1/sqrt(d_k) already folded into Wq)
    # k, v: (1, S, d_model); bias: (1, tq, S) additive mask (0 / -1e9), bf16
    # o: (1, tq, d_model)   heads laid out contiguously along the lane dim
    tq = q_ref.shape[1]
    S = k_ref.shape[1]
    d_model = q_ref.shape[2]
    d_k = d_model // heads

    q = q_ref[0]
    k = k_ref[0]
    v = v_ref[0]
    bias = bias_ref[0].astype(jnp.float32)

    head_outs = []
    for h in range(heads):                       # static unroll over heads
        lo, hi = h * d_k, (h + 1) * d_k
        qh = q[:, lo:hi]                         # (tq, d_k)
        kh = k[:, lo:hi]                         # (S, d_k)
        vh = v[:, lo:hi]                         # (S, d_k)

        # Q K^T without materializing a transposed copy of K.
        s = lax.dot_general(qh, kh, (((1,), (1,)), ((), ())),
                            preferred_element_type=jnp.float32)      # (tq, S)
        s = s + bias                                                  # masked add
        s = s - jnp.max(s, axis=-1, keepdims=True)
        p = jnp.exp(s)
        denom = jnp.sum(p, axis=-1, keepdims=True)
        p = p * pl.reciprocal(denom, approx=True)                     # EUP slot

        head_outs.append(jnp.dot(p.astype(vh.dtype), vh,
                                 preferred_element_type=jnp.float32))  # (tq, d_k)

    out = jnp.concatenate(head_outs, axis=-1)      # (tq, d_model) lane-dense store
    o_ref[0] = out.astype(o_ref.dtype)


def attention(Q, K, V, bias, heads, *, tq_target=256):
    """Q, K, V: (B, S, d_model) with heads packed along the last dim;
    bias: (B, S, S) additive mask.  Returns (B, S, d_model)."""
    B, S, d_model = Q.shape
    tq = _pick_tile(S, tq_target, 16)
    grid = (B, S // tq)
    kernel = functools.partial(_mha_attention_kernel, heads=heads)
    return pl.pallas_call(
        kernel,
        out_shape=jax.ShapeDtypeStruct((B, S, d_model), Q.dtype),
        grid=grid,
        in_specs=[
            pl.BlockSpec((1, tq, d_model), lambda b, qi: (b, qi, 0)),  # Q tile
            pl.BlockSpec((1, S, d_model), lambda b, qi: (b, 0, 0)),    # K (resident per b)
            pl.BlockSpec((1, S, d_model), lambda b, qi: (b, 0, 0)),    # V (resident per b)
            pl.BlockSpec((1, tq, S), lambda b, qi: (b, qi, 0)),        # mask bias
        ],
        out_specs=pl.BlockSpec((1, tq, d_model), lambda b, qi: (b, qi, 0)),
        compiler_params=_compiler_params(("parallel", "parallel")),
    )(Q, K, V, bias)


# ------------------------------ module wrapper ------------------------------ #

def init_params(key, d_model):
    """Deterministic parameter init (shapes match nn.Linear(d_model, d_model))."""
    ks = jax.random.split(key, 8)
    bound = 1.0 / math.sqrt(d_model)

    def lin(kw, kb):
        w = jax.random.uniform(kw, (d_model, d_model), jnp.float32, -bound, bound)
        b = jax.random.uniform(kb, (1, d_model), jnp.float32, -bound, bound)
        return w, b

    wq, bq = lin(ks[0], ks[1])
    wk, bk = lin(ks[2], ks[3])
    wv, bv = lin(ks[4], ks[5])
    wo, bo = lin(ks[6], ks[7])
    return dict(wq=wq, bq=bq, wk=wk, bk=bk, wv=wv, bv=bv, wo=wo, bo=bo)


def multi_head_attention(q, k, v, mask, params, heads):
    B, S, d_model = q.shape
    d_k = d_model // heads
    scale = jnp.float32(1.0 / math.sqrt(d_k))

    # Fold the softmax scale into the Q projection (zero in-kernel cost) and stack
    # the three projections so one pipelined pallas_call handles Q, K and V.
    w_stack = jnp.stack([params["wq"] * scale, params["wk"], params["wv"]])
    b_stack = jnp.stack([params["bq"] * scale, params["bk"], params["bv"]])
    x_stack = jnp.stack([q.reshape(B * S, d_model),
                         k.reshape(B * S, d_model),
                         v.reshape(B * S, d_model)])

    qkv = qkv_projection(x_stack, w_stack, b_stack)        # (3, B*S, d_model)
    Q = qkv[0].reshape(B, S, d_model)
    K = qkv[1].reshape(B, S, d_model)
    V = qkv[2].reshape(B, S, d_model)

    # Additive attention bias (0 keep / -1e9 masked), bf16 to halve the mask DMA.
    bias = jnp.where(mask[:, 0] == 0,
                     jnp.float32(-1e9), jnp.float32(0.0)).astype(jnp.bfloat16)

    x = attention(Q, K, V, bias, heads)                    # (B, S, d_model)

    out = linear(x.reshape(B * S, d_model), params["wo"], params["bo"])
    return out.reshape(B, S, d_model)


# ----------------------------------- main ----------------------------------- #

if __name__ == "__main__":
    B, S, d_model, heads = 2, 8, 32, 4
    dropout = 0.0  # identity (eval mode)

    root = jax.random.PRNGKey(0)
    k_params, k_q, k_k, k_v = jax.random.split(root, 4)

    params = init_params(k_params, d_model)

    q = jax.random.normal(k_q, (B, S, d_model), jnp.float32)
    k = jax.random.normal(k_k, (B, S, d_model), jnp.float32)
    v = jax.random.normal(k_v, (B, S, d_model), jnp.float32)

    # causal mask, shape (B, 1, S, S); 1 = keep, 0 = masked out
    causal = jnp.tril(jnp.ones((S, S), jnp.int32))
    mask = jnp.broadcast_to(causal[None, None, :, :], (B, 1, S, S))

    out = multi_head_attention(q, k, v, mask, params, heads)
    jax.block_until_ready(out)

    # sanity check against pure-JAX reference
    def ref(q, k, v, mask, p):
        Q = q @ p["wq"] + p["bq"]
        K = k @ p["wk"] + p["bk"]
        V = v @ p["wv"] + p["bv"]
        d_kk = d_model // heads
        Qh = Q.reshape(B, S, heads, d_kk).transpose(0, 2, 1, 3)
        Kh = K.reshape(B, S, heads, d_kk).transpose(0, 2, 1, 3)
        Vh = V.reshape(B, S, heads, d_kk).transpose(0, 2, 1, 3)
        s = jnp.einsum("bhqd,bhkd->bhqk", Qh, Kh) / math.sqrt(d_kk)
        s = jnp.where(mask == 0, -1e9, s)
        a = jax.nn.softmax(s, axis=-1)
        x = jnp.einsum("bhqk,bhkd->bhqd", a, Vh)
        x = x.transpose(0, 2, 1, 3).reshape(B, S, d_model)
        return x @ p["wo"] + p["bo"]

    expected = ref(q, k, v, mask, params)
    # tolerance accounts for the approximate-reciprocal softmax normalization
    assert jnp.allclose(out, expected, atol=3e-3, rtol=3e-3), "mismatch vs reference"

    print("KERNEL_OK")
</pallas_src>

<mosaic_0001>
module attributes {stable_mosaic.version = 11 : i64} {
  func.func @_qkv_proj_kernel(%arg0: i32, %arg1: i32, %arg2: i32, %arg3: memref<1x16x32xf32, #tpu.memory_space<vmem>>, %arg4: memref<1x32x32xf32, #tpu.memory_space<vmem>>, %arg5: memref<1x1x32xf32, #tpu.memory_space<vmem>>, %arg6: memref<1x16x32xf32, #tpu.memory_space<vmem>>) attributes {dimension_semantics = [#tpu.dimension_semantics<parallel>, #tpu.dimension_semantics<parallel>, #tpu.dimension_semantics<parallel>], iteration_bounds = array<i64: 3, 1, 1>, scalar_prefetch = 0 : i64, scratch_operands = 0 : i64, tpu.core_type = #tpu.core_type<tc>, window_params = [{transform_indices = @transform_0, window_bounds = array<i64: 1, 16, 32>}, {transform_indices = @transform_1, window_bounds = array<i64: 1, 32, 32>}, {transform_indices = @transform_2, window_bounds = array<i64: 1, 1, 32>}, {transform_indices = @transform_3, window_bounds = array<i64: 1, 16, 32>}]} {
    %c0 = arith.constant 0 : index
    %c0_0 = arith.constant 0 : index
    %c0_1 = arith.constant 0 : index
    %0 = vector.load %arg3[%c0, %c0_0, %c0_1] : memref<1x16x32xf32, #tpu.memory_space<vmem>>, vector<1x16x32xf32>
    %1 = vector.shape_cast %0 : vector<1x16x32xf32> to vector<16x32xf32>
    %c0_2 = arith.constant 0 : index
    %c0_3 = arith.constant 0 : index
    %c0_4 = arith.constant 0 : index
    %2 = vector.load %arg4[%c0_2, %c0_3, %c0_4] : memref<1x32x32xf32, #tpu.memory_space<vmem>>, vector<1x32x32xf32>
    %3 = vector.shape_cast %2 : vector<1x32x32xf32> to vector<32x32xf32>
    %cst = arith.constant dense<0.000000e+00> : vector<16x32xf32>
    %4 = tpu.matmul %1, %3, %cst {dimension_numbers = #tpu.dot_dimension_numbers<[1], [0], [0], [1], [0, 0, 1, 1], [], []>} : vector<16x32xf32>, vector<32x32xf32>, vector<16x32xf32> -> vector<16x32xf32>
    %c0_5 = arith.constant 0 : index
    %c0_6 = arith.constant 0 : index
    %c0_7 = arith.constant 0 : index
    %5 = vector.load %arg5[%c0_5, %c0_6, %c0_7] : memref<1x1x32xf32, #tpu.memory_space<vmem>>, vector<1x1x32xf32>
    %6 = vector.shape_cast %5 : vector<1x1x32xf32> to vector<1x32xf32>
    %7 = vector.broadcast %6 : vector<1x32xf32> to vector<16x32xf32>
    %8 = arith.addf %4, %7 : vector<16x32xf32>
    %c0_8 = arith.constant 0 : index
    %c0_9 = arith.constant 0 : index
    %c0_10 = arith.constant 0 : index
    %9 = vector.load %arg6[%c0_8, %c0_9, %c0_10] : memref<1x16x32xf32, #tpu.memory_space<vmem>>, vector<1x16x32xf32>
    %10 = vector.shape_cast %9 : vector<1x16x32xf32> to vector<16x32xf32>
    %11 = vector.shape_cast %8 : vector<16x32xf32> to vector<1x16x32xf32>
    tpu.vector_store %arg6[%c0_8, %c0_9, %c0_10], %11 {strides = array<i32>} : memref<1x16x32xf32, #tpu.memory_space<vmem>>, vector<1x16x32xf32>,
    return
  }
  func.func @transform_0(%arg0: i32, %arg1: i32, %arg2: i32) -> (i32, i32, i32) {
    %c0_i32 = arith.constant 0 : i32
    %c0_i32_0 = arith.constant 0 : i32
    return %arg0, %arg1, %c0_i32 : i32, i32, i32
  }
  func.func @transform_1(%arg0: i32, %arg1: i32, %arg2: i32) -> (i32, i32, i32) {
    %c0_i32 = arith.constant 0 : i32
    %c0_i32_0 = arith.constant 0 : i32
    return %arg0, %c0_i32, %arg2 : i32, i32, i32
  }
  func.func @transform_2(%arg0: i32, %arg1: i32, %arg2: i32) -> (i32, i32, i32) {
    %c0_i32 = arith.constant 0 : i32
    %c0_i32_0 = arith.constant 0 : i32
    return %arg0, %c0_i32, %arg2 : i32, i32, i32
  }
  func.func @transform_3(%arg0: i32, %arg1: i32, %arg2: i32) -> (i32, i32, i32) {
    %c0_i32 = arith.constant 0 : i32
    return %arg0, %arg1, %arg2 : i32, i32, i32
  }
}

</mosaic_0001>

<llo_original>
// kernel: tpu_custom_call.1
$region0: #{tpu_custom_call.1}
  #allocation0 [shape = 'u32[]', space=smem, size = 0x4, offset = 0x4, fixed_abs, tag = 'smem constant byte address 0x4 - core index']
  #allocation1 [shape = 'u32[72,128]{1,0:T(1,128)}', space=vmem, size = 0x9000, scoped, tag = 'internal scratch']
  %s0 = inlined_call_operand.hbm [shape: f32[3,16,32], index: 0, kind: input, shape index: {}]
  %s1 = inlined_call_operand.hbm [shape: f32[3,32,32], index: 1, kind: input, shape index: {}]
  %s2 = inlined_call_operand.hbm [shape: f32[3,1,32], index: 2, kind: input, shape index: {}]
  %s3 = inlined_call_operand.hbm [shape: f32[3,16,32], index: 3, kind: output, shape index: {}]
  %s4 = sld [smem:[#allocation0]]
  $region57: #{tpu_custom_call.1} parent=0
    _
  %s6 = ssub.s32 1, %s4
  %s7 = scalar_select 0, %s6, %s4
  $region1: #{tpu_custom_call.1} parent=0
    #allocation2 [shape = 'u8[16384]{0}', space=vmem, size = 0x4000, scoped, tag = 'input window, operand 0']
    #allocation3 [shape = 's32[2]{0}', space=sflag, size = 0x8, scoped, tag = 'scoped memory for tpu_custom_call.1']
    #allocation4 [shape = 's32[2]{0}', space=sflag, size = 0x8, scoped, tag = 'scoped memory for tpu_custom_call.1']
    #allocation5 [shape = 'u8[32768]{0}', space=vmem, size = 0x8000, scoped, tag = 'input window, operand 1']
    #allocation6 [shape = 's32[2]{0}', space=sflag, size = 0x8, scoped, tag = 'scoped memory for tpu_custom_call.1']
    #allocation7 [shape = 'u8[1024]{0}', space=vmem, size = 0x400, scoped, tag = 'input window, operand 2']
    #allocation8 [shape = 'u8[16384]{0}', space=vmem, size = 0x4000, scoped, tag = 'output window, operand 0']
    %8 = vsyncpa [#allocation3], 0
    %s9 = scalar_lea.sflag [#allocation3], 1
    %10 = vsyncpa %s9, 0
    %11 = vsyncpa [#allocation6], 0
    %s12 = scalar_lea.sflag [#allocation6], 1
    %13 = vsyncpa %s12, 0
    %14 = vsyncpa [#allocation4], 0
    %s15 = scalar_lea.sflag [#allocation4], 1
    %16 = vsyncpa %s15, 0
    loop: start=0, step=1, limit=5
    $region2: #{tpu_custom_call.1} parent=1 // loop_pre_header
      _
    $region3: #{tpu_custom_call.1} parent=1 // loop_header
      %s18 = sphi 0, %s22
      %p19 = scmp.ge.s32.totalorder %s18, 5
      %s25 = sphi 0, %s44
      %s26 = sphi 0, %s40
      %s27 = sphi 0, %s36
      %s28 = sphi 0, %s25
      %s29 = sphi 0, %s26
      %s30 = sphi 0, %s27
      %s31 = sphi 0, %s28
      %s32 = sphi 0, %s29
      %s33 = sphi 0, %s30
      %s49 = sphi 0, %s51
      %s52 = sphi 0, %s49
      %s53 = sphi 0, %s52
      %s69 = sphi 0, %s53
      %s77 = sphi 0, %s79
      %s80 = sphi 0, %s77
      %s81 = sphi 0, %s80
      %s97 = sphi 0, %s81
      %s105 = sphi 0, %s107
      %s108 = sphi 0, %s105
      %s109 = sphi 0, %s108
      %s125 = sphi 0, %s109
      %s135 = sphi 0, %s137
      %s138 = sphi 0, %s135
      %s139 = sphi 0, %s138
      %s155 = sphi 0, %s139
    $region4: #{tpu_custom_call.1} parent=1 // loop_header_branch
      %21 = sbr.rel (%p19) target = $region8
    $region5: #{tpu_custom_call.1} parent=1 // loop_body
      %s23 = ssub.s32 %s18, 1
      %s24 = ssub.s32 %s18, 2
      %s34 = sadd.s32 1, %s27
      %p35 = scmp.ge.s32.totalorder %s34, 1
      %s36 = scalar_select %p35, 0, %s34
      %s37 = sadd.s32 1, %s26
      %s38 = scalar_select %p35, %s37, %s26
      %p39 = scmp.ge.s32.totalorder %s38, 1
      %s40 = scalar_select %p39, 0, %s38
      %s41 = sadd.s32 1, %s25
      %s42 = scalar_select %p39, %s41, %s25
      %p43 = scmp.ge.s32.totalorder %s42, 3
      %s44 = scalar_select %p43, 0, %s42
      %s45 = ssub.s32 %s25, %s44
      %s46 = ssub.s32 %s26, %s40
      %s47 = sor.u32 %s45, %s46
      %p48 = scmp.eq.s32.totalorder %s47, 0
      %s50 = sadd.s32 %s49, 1
      %s51 = scalar_select %p48, %s49, %s50
      %p54 = pneg %p48
      %p55 = scmp.eq.s32.totalorder %s18, 2
      %p56 = por %p54, %p55
      %p57 = scmp.ne.s32.totalorder %s49, %s52
      %p58 = scmp.eq.s32.totalorder %s18, 0
      %p59 = por %p57, %p58
      %p60 = scmp.ne.s32.totalorder %s49, %s52
      %p61 = scmp.eq.s32.totalorder %s23, 2
      %p62 = por %p60, %p61
      %p63 = scmp.ne.s32.totalorder %s52, %s53
      %p64 = scmp.eq.s32.totalorder %s23, 0
      %p65 = por %p63, %p64
      %p66 = scmp.ne.s32.totalorder %s52, %s53
      %p67 = scmp.eq.s32.totalorder %s24, 2
      %p68 = por %p66, %p67
      %p70 = scmp.ne.s32.totalorder %s53, %s69
      %p71 = scmp.eq.s32.totalorder %s24, 0
      %p72 = por %p70, %p71
      %s73 = ssub.s32 %s25, %s44
      %s74 = ssub.s32 %s27, %s36
      %s75 = sor.u32 %s73, %s74
      %p76 = scmp.eq.s32.totalorder %s75, 0
      %s78 = sadd.s32 %s77, 1
      %s79 = scalar_select %p76, %s77, %s78
      %p82 = pneg %p76
      %p83 = scmp.eq.s32.totalorder %s18, 2
      %p84 = por %p82, %p83
      %p85 = scmp.ne.s32.totalorder %s77, %s80
      %p86 = scmp.eq.s32.totalorder %s18, 0
      %p87 = por %p85, %p86
      %p88 = scmp.ne.s32.totalorder %s77, %s80
      %p89 = scmp.eq.s32.totalorder %s23, 2
      %p90 = por %p88, %p89
      %p91 = scmp.ne.s32.totalorder %s80, %s81
      %p92 = scmp.eq.s32.totalorder %s23, 0
      %p93 = por %p91, %p92
      %p94 = scmp.ne.s32.totalorder %s80, %s81
      %p95 = scmp.eq.s32.totalorder %s24, 2
      %p96 = por %p94, %p95
      %p98 = scmp.ne.s32.totalorder %s81, %s97
      %p99 = scmp.eq.s32.totalorder %s24, 0
      %p100 = por %p98, %p99
      %s101 = ssub.s32 %s25, %s44
      %s102 = ssub.s32 %s27, %s36
      %s103 = sor.u32 %s101, %s102
      %p104 = scmp.eq.s32.totalorder %s103, 0
      %s106 = sadd.s32 %s105, 1
      %s107 = scalar_select %p104, %s105, %s106
      %p110 = pneg %p104
      %p111 = scmp.eq.s32.totalorder %s18, 2
      %p112 = por %p110, %p111
      %p113 = scmp.ne.s32.totalorder %s105, %s108
      %p114 = scmp.eq.s32.totalorder %s18, 0
      %p115 = por %p113, %p114
      %p116 = scmp.ne.s32.totalorder %s105, %s108
      %p117 = scmp.eq.s32.totalorder %s23, 2
      %p118 = por %p116, %p117
      %p119 = scmp.ne.s32.totalorder %s108, %s109
      %p120 = scmp.eq.s32.totalorder %s23, 0
      %p121 = por %p119, %p120
      %p122 = scmp.ne.s32.totalorder %s108, %s109
      %p123 = scmp.eq.s32.totalorder %s24, 2
      %p124 = por %p122, %p123
      %p126 = scmp.ne.s32.totalorder %s109, %s125
      %p127 = scmp.eq.s32.totalorder %s24, 0
      %p128 = por %p126, %p127
      %s129 = ssub.s32 %s25, %s44
      %s130 = ssub.s32 %s26, %s40
      %s131 = sor.u32 %s129, %s130
      %s132 = ssub.s32 %s27, %s36
      %s133 = sor.u32 %s131, %s132
      %p134 = scmp.eq.s32.totalorder %s133, 0
      %s136 = sadd.s32 %s135, 1
      %s137 = scalar_select %p134, %s135, %s136
      %p140 = pneg %p134
      %p141 = scmp.eq.s32.totalorder %s18, 2
      %p142 = por %p140, %p141
      %p143 = scmp.ne.s32.totalorder %s135, %s138
      %p144 = scmp.eq.s32.totalorder %s18, 0
      %p145 = por %p143, %p144
      %p146 = scmp.ne.s32.totalorder %s135, %s138
      %p147 = scmp.eq.s32.totalorder %s23, 2
      %p148 = por %p146, %p147
      %p149 = scmp.ne.s32.totalorder %s138, %s139
      %p150 = scmp.eq.s32.totalorder %s23, 0
      %p151 = por %p149, %p150
      %p152 = scmp.ne.s32.totalorder %s138, %s139
      %p153 = scmp.eq.s32.totalorder %s24, 2
      %p154 = por %p152, %p153
      %p156 = scmp.ne.s32.totalorder %s139, %s155
      %p157 = scmp.eq.s32.totalorder %s24, 0
      %p158 = por %p156, %p157
      %p159 = scmp.le.s32.totalorder 1, %s18
      %p160 = scmp.lt.s32.totalorder %s18, 4
      %p161 = pnand %p159, %p160
      %p162 = pneg %p161
      // Predicated region
      $region9: #{tpu_custom_call.1} parent=5 // pred_check
        _
      $region10: #{tpu_custom_call.1} parent=5 // pred_check_branch
        %164 = sbr.rel (%p161) target = $region12
      $region11: #{tpu_custom_call.1} parent=5 // pred_region
        %s165 = ssub.s32 %s18, 1
      $region12: #{tpu_custom_call.1} parent=5 // pred_fallthru
        _
      %p166 = scmp.lt.s32.totalorder %s18, 3
      // Predicated region
      $region13: #{tpu_custom_call.1} parent=5 // pred_check
        %p167 = pneg %p166
      $region14: #{tpu_custom_call.1} parent=5 // pred_check_branch
        %169 = sbr.rel (%p167) target = $region16
      $region15: #{tpu_custom_call.1} parent=5 // pred_region
        // Predicated region
        $region17: #{tpu_custom_call.1} parent=15 // pred_check
          %p170 = pneg %p59
        $region18: #{tpu_custom_call.1} parent=15 // pred_check_branch
          %172 = sbr.rel (%p170) target = $region20
        $region19: #{tpu_custom_call.1} parent=15 // pred_region
          %s173 = sand.u32 %s49, 1
          %s174 = scalar_lea.sflag [#allocation3], %s173
          %s175 = sand.u32 %s49, 1
          %s176 = smul.addr %s175, 16
          %s177 = scalar_lea.vmem [#allocation2], %s176
          %s178 = smul.u32 2, %s26
          %180 = vsyncadd %s174, 0
          %s181 = smul.addr %s25, 2
          %s182 = sadd.s32 %s178, %s181
          %s183 = smul.addr %s182, 8
          %s184 = scalar_lea.hbm %s0, %s183
          %s185 = sshll.u32 %s184, 4
          %s186 = int_to_ptr.hbm [resolvable:$true] %s185
          %s187 = sshll.u32 %s177, 4
          %s188 = int_to_ptr.vmem [resolvable:$true] %s187
          %193 = dma.hbm_to_vmem [thread:$0]  %s186, 256, %s188, %s174, 128, 128, 8
        $region20: #{tpu_custom_call.1} parent=15 // pred_fallthru
          _
        // Predicated region
        $region21: #{tpu_custom_call.1} parent=15 // pred_check
          %p194 = pneg %p87
        $region22: #{tpu_custom_call.1} parent=15 // pred_check_branch
          %196 = sbr.rel (%p194) target = $region24
        $region23: #{tpu_custom_call.1} parent=15 // pred_region
          %s197 = sand.u32 %s18, 1
          %s198 = scalar_lea.sflag [#allocation6], %s197
          %s199 = sand.u32 %s77, 1
          %s200 = smul.addr %s199, 32
          %s201 = scalar_lea.vmem [#allocation5], %s200
          %203 = vsyncadd %s198, 0
          %s204 = smul.addr %s25, 4
          %s205 = sadd.s32 %s27, %s204
          %s206 = smul.addr %s205, 8
          %s207 = scalar_lea.hbm %s1, %s206
          %s208 = sshll.u32 %s207, 4
          %s209 = int_to_ptr.hbm [resolvable:$true] %s208
          %s210 = sshll.u32 %s201, 4
          %s211 = int_to_ptr.vmem [resolvable:$true] %s210
          %216 = dma.hbm_to_vmem [thread:$0]  %s209, 512, %s211, %s198, 128, 128, 8
        $region24: #{tpu_custom_call.1} parent=15 // pred_fallthru
          _
        // Predicated region
        $region25: #{tpu_custom_call.1} parent=15 // pred_check
          %p217 = pneg %p115
        $region26: #{tpu_custom_call.1} parent=15 // pred_check_branch
          %219 = sbr.rel (%p217) target = $region28
        $region27: #{tpu_custom_call.1} parent=15 // pred_region
          %s220 = sand.u32 %s18, 1
          %s221 = scalar_lea.sflag [#allocation6], %s220
          %s222 = sand.u32 %s105, 1
          %s223 = scalar_lea.vmem [#allocation7], %s222
          %225 = vsyncadd %s221, 0
          %s226 = sadd.s32 %s27, %s25
          %s227 = scalar_lea.hbm %s2, %s226
          %s229 = sshll.u32 %s227, 4
          %s230 = int_to_ptr.hbm [resolvable:$true] %s229
          %s231 = sshll.u32 %s223, 4
          %s232 = int_to_ptr.vmem [resolvable:$true] %s231
          %234 = dma.hbm_to_vmem [thread:$0]  %s230, 16, %s232, %s221
        $region28: #{tpu_custom_call.1} parent=15 // pred_fallthru
          _
      $region16: #{tpu_custom_call.1} parent=5 // pred_fallthru
        _
      %p235 = scmp.le.s32.totalorder 1, %s18
      %p236 = scmp.lt.s32.totalorder %s18, 4
      %p237 = pnand %p235, %p236
      %p238 = pneg %p237
      // Predicated region
      $region29: #{tpu_custom_call.1} parent=5 // pred_check
        _
      $region30: #{tpu_custom_call.1} parent=5 // pred_check_branch
        %240 = sbr.rel (%p237) target = $region32
      $region31: #{tpu_custom_call.1} parent=5 // pred_region
        %s241 = ssub.s32 %s18, 1
        %s242 = sand.u32 %s52, 1
        %s243 = scalar_lea.sflag [#allocation3], %s242
        %s244 = sand.u32 %s52, 1
        %s245 = smul.addr %s244, 16
        %s246 = scalar_lea.vmem [#allocation2], %s245
        // Predicated region
        $region33: #{tpu_custom_call.1} parent=31 // pred_check
          %p247 = pneg %p65
        $region34: #{tpu_custom_call.1} parent=31 // pred_check_branch
          %249 = sbr.rel (%p247) target = $region36
        $region35: #{tpu_custom_call.1} parent=31 // pred_region
          %251 = dma.done %s243, 256
        $region36: #{tpu_custom_call.1} parent=31 // pred_fallthru
          _
        %s252 = sand.u32 %s23, 1
        %s253 = scalar_lea.sflag [#allocation6], %s252
        %s254 = sand.u32 %s80, 1
        %s255 = smul.addr %s254, 32
        %s256 = scalar_lea.vmem [#allocation5], %s255
        // Predicated region
        $region37: #{tpu_custom_call.1} parent=31 // pred_check
          %p257 = pneg %p93
        $region38: #{tpu_custom_call.1} parent=31 // pred_check_branch
          %259 = sbr.rel (%p257) target = $region40
        $region39: #{tpu_custom_call.1} parent=31 // pred_region
          %261 = dma.done %s253, 512
        $region40: #{tpu_custom_call.1} parent=31 // pred_fallthru
          _
        %s262 = sand.u32 %s23, 1
        %s263 = scalar_lea.sflag [#allocation6], %s262
        %s264 = sand.u32 %s108, 1
        %s265 = scalar_lea.vmem [#allocation7], %s264
        // Predicated region
        $region41: #{tpu_custom_call.1} parent=31 // pred_check
          %p266 = pneg %p121
        $region42: #{tpu_custom_call.1} parent=31 // pred_check_branch
          %268 = sbr.rel (%p266) target = $region44
        $region43: #{tpu_custom_call.1} parent=31 // pred_region
          %270 = dma.done %s263, 16
        $region44: #{tpu_custom_call.1} parent=31 // pred_fallthru
          _
        %s271 = sand.u32 %s52, 1
        %s272 = scalar_lea.sflag [#allocation3], %s271
        %s273 = sand.u32 %s52, 1
        %s274 = smul.addr %s273, 16
        %s275 = scalar_lea.vmem [#allocation2], %s274
        %p276 = pneg %p65
        %p277 = pneg %p62
        %s278 = sand.u32 %s23, 1
        %s279 = scalar_lea.sflag [#allocation6], %s278
        %s280 = sand.u32 %s80, 1
        %s281 = smul.addr %s280, 32
        %s282 = scalar_lea.vmem [#allocation5], %s281
        %p283 = pneg %p93
        %p284 = pneg %p90
        %s285 = sand.u32 %s23, 1
        %s286 = scalar_lea.sflag [#allocation6], %s285
        %s287 = sand.u32 %s108, 1
        %s288 = scalar_lea.vmem [#allocation7], %s287
        %p289 = pneg %p121
        %p290 = pneg %p118
        %p291 = pneg %p151
        %p292 = pneg %p148
        %s293 = sand.u32 %s138, 1
        %s294 = scalar_lea.sflag [#allocation4], %s293
        %s295 = sand.u32 %s138, 1
        %s296 = smul.addr %s295, 16
        %s297 = scalar_lea.vmem [#allocation8], %s296
        %s298 = smul.u32 2, %s29
        %s299 = smul.u32 2, %s29
        %v300 = vld [vmem:[%s246] sm:$0xff]
        %v301 = vld [vmem:[%s246 + $0x8] sm:$0xff]
        %v302 = vld [vmem:[%s256] sm:$0xff]
        %v303 = vld [vmem:[%s256 + $0x8] sm:$0xff]
        %v304 = vld [vmem:[%s256 + $0x10] sm:$0xff]
        %v305 = vld [vmem:[%s256 + $0x18] sm:$0xff]
        %v306 = vld [vmem:[%s265] sm:$0x1]
        %v308 = vperm.slane %v306, 0
        %vm310 = vcmask 261120
        %v312 = vsel %vm310, %v300, 0
        %v315 = vsel %vm310, %v301, 0
        %317 = vmatpush.msra.mxu0 0.0
        %318 = vmatpush.msra.mxu0 0.0
        %319 = vmatpush.msra.mxu0 0.0
        %320 = vmatpush.msra.mxu0 0.0
        %321 = vmatpush.msra.mxu0 0.0
        %322 = vmatpush.msra.mxu0 0.0
        %323 = vmatpush.msra.mxu0 0.0
        %324 = vmatpush.msra.mxu0 0.0
        %325 = vmatpush.msra.mxu0 0.0
        %326 = vmatpush.msra.mxu0 0.0
        %327 = vmatpush.msra.mxu0 0.0
        %328 = vmatpush.msra.mxu0 0.0
        %329 = vmatpush.msra.mxu0 %v305
        %330 = vmatpush.msra.mxu0 %v304
        %331 = vmatpush.msra.mxu0 %v303
        %332 = vmatpush.msra.mxu0 %v302
        %333 = vmatmul.f32.gmra.mxu0 %v312
        %v334 = vpop.f32.mrf.mxu0
        %v335 = vadd.f32 %v308, %v334
        %336 = vmatmul.f32.gmra.mxu0 %v315
        %v337 = vpop.f32.mrf.mxu0
        %v338 = vadd.f32 %v308, %v337
        %339 = vdwg.mxu0
        %340 = vst.msk [vmem:[%s297] sm:$0xff] %vm310, %v335
        %341 = vst.msk [vmem:[%s297 + $0x8] sm:$0xff] %vm310, %v338
        %s342 = sand.u32 %s138, 1
        %s343 = scalar_lea.sflag [#allocation4], %s342
        %s344 = sand.u32 %s138, 1
        %s345 = smul.addr %s344, 16
        %s346 = scalar_lea.vmem [#allocation8], %s345
        // Predicated region
        $region45: #{tpu_custom_call.1} parent=31 // pred_check
          %p347 = pneg %p148
        $region46: #{tpu_custom_call.1} parent=31 // pred_check_branch
          %349 = sbr.rel (%p347) target = $region48
        $region47: #{tpu_custom_call.1} parent=31 // pred_region
          %s350 = smul.u32 2, %s29
          %352 = vsyncadd %s343, 0
          %s353 = sadd.s32 %s30, %s350
          %s354 = smul.addr %s28, 2
          %s355 = sadd.s32 %s353, %s354
          %s356 = smul.addr %s355, 8
          %s357 = scalar_lea.hbm %s3, %s356
          %s358 = sshll.u32 %s346, 4
          %s359 = int_to_ptr.vmem [resolvable:$true] %s358
          %s360 = sshll.u32 %s357, 4
          %s361 = int_to_ptr.hbm [resolvable:$true] %s360
          %366 = dma.vmem_to_hbm [thread:$0]  %s359, 256, %s361, %s343, 128, 128, 8
        $region48: #{tpu_custom_call.1} parent=31 // pred_fallthru
          _
      $region32: #{tpu_custom_call.1} parent=5 // pred_fallthru
        _
      %p367 = scmp.le.s32.totalorder 2, %s18
      // Predicated region
      $region49: #{tpu_custom_call.1} parent=5 // pred_check
        %p368 = pneg %p367
      $region50: #{tpu_custom_call.1} parent=5 // pred_check_branch
        %370 = sbr.rel (%p368) target = $region52
      $region51: #{tpu_custom_call.1} parent=5 // pred_region
        %s371 = ssub.s32 %s18, 2
        // Predicated region
        $region53: #{tpu_custom_call.1} parent=51 // pred_check
          %p372 = pneg %p154
        $region54: #{tpu_custom_call.1} parent=51 // pred_check_branch
          %374 = sbr.rel (%p372) target = $region56
        $region55: #{tpu_custom_call.1} parent=51 // pred_region
          %s375 = sand.u32 %s139, 1
          %s376 = scalar_lea.sflag [#allocation4], %s375
          %s377 = sand.u32 %s139, 1
          %s378 = smul.addr %s377, 16
          %s379 = scalar_lea.vmem [#allocation8], %s378
          %381 = dma.done %s376, 256
        $region56: #{tpu_custom_call.1} parent=51 // pred_fallthru
          _
      $region52: #{tpu_custom_call.1} parent=5 // pred_fallthru
        _
    $region6: #{tpu_custom_call.1} parent=1 // loop_footer
      %s22 = sadd.s32 1, %s18
    $region7: #{tpu_custom_call.1} parent=1 // loop_footer_branch
      %17 = sbr.rel target = $region3
    $region8: #{tpu_custom_call.1} parent=1 // loop_exit
      _
    %382 = vsyncpa [#allocation3], 1
    %s383 = scalar_lea.sflag [#allocation3], 1
    %384 = vsyncpa %s383, 1
    %385 = vsyncpa [#allocation6], 1
    %s386 = scalar_lea.sflag [#allocation6], 1
    %387 = vsyncpa %s386, 1
    %388 = vsyncpa [#allocation4], 1
    %s389 = scalar_lea.sflag [#allocation4], 1
    %390 = vsyncpa %s389, 1

</llo_original>
